<compile_context>
chip_gen: v7x
topology: tpu7x:2x2x1
jax: 0.10.0
libtpu: 0.0.40
codegen_flags: <defaults>
</compile_context>

<pallas_src>
import functools

import jax
import jax.numpy as jnp
from jax import lax
from jax.experimental import pallas as pl
from jax.experimental.pallas import tpu as pltpu

LANES = 128
ACC_ROWS = 8            # (8, 128) f32 accumulator = exactly one vreg
MAX_TILE_ROWS = 8192    # 8192 x 128 x 4B = 4 MiB per f32 block (8 MiB dbl-buffered)


def _round_down(x, m):
    return (x // m) * m


def _gmof_partial_kernel(x_ref, out_ref, *, rho_sq, slabs, unroll):
    """Accumulates sum of rho^2 * x^2 / (x^2 + rho^2) onto an (8,128) block."""
    @pl.when(pl.program_id(0) == 0)
    def _():
        out_ref[...] = jnp.zeros_like(out_ref)

    def body(i, acc):
        r = pl.multiple_of(i * ACC_ROWS, ACC_ROWS)
        x = x_ref[pl.ds(r, ACC_ROWS), :].astype(jnp.float32)
        sq = x * x
        # EUP reciprocal instead of a VALU divide; approx=False keeps full
        # precision so results track the exact-divide reference.
        return acc + (rho_sq * sq) * pl.reciprocal(sq + rho_sq, approx=False)

    out_ref[...] += lax.fori_loop(
        0, slabs, body,
        jnp.zeros((ACC_ROWS, LANES), jnp.float32),
        unroll=unroll)


def _gmof_sum_jnp(x, rho_sq):
    """Plain-XLA GMoF partial sum for small slices (tails / tiny inputs)."""
    xf = x.astype(jnp.float32)
    sq = xf * xf
    return jnp.sum((rho_sq * sq) / (sq + rho_sq), dtype=jnp.float32)


def gmof(residual, rho=1.0, max_tile_rows=MAX_TILE_ROWS):
    """GMoF forward: returns a scalar float32, matching torch.mean semantics."""
    rho_sq = float(rho) ** 2
    n_elems = residual.size

    flat = jnp.ravel(residual)              # bitcast for contiguous inputs
    n_rows = n_elems // LANES               # full lane-rows
    head_elems = n_rows * LANES

    total = jnp.float32(0.0)
    kernel_rows = 0

    if n_rows >= ACC_ROWS:
        # Lane-dense 2-D view of the lane-aligned head. When n_elems is a
        # multiple of 128 this reshape is free; otherwise only a prefix slice
        # is taken (no full-array pad copy).
        if head_elems == n_elems:
            x2d = flat.reshape(n_rows, LANES)
        else:
            x2d = flat[:head_elems].reshape(n_rows, LANES)

        # Tile sizing: as close to max_tile_rows as possible (multiple of 8),
        # balanced so the uncovered remainder stays small.
        cap = max(ACC_ROWS, _round_down(int(max_tile_rows), ACC_ROWS))
        est_tiles = pl.cdiv(n_rows, cap)
        tile_rows = min(cap, max(ACC_ROWS,
                                 _round_down(n_rows // est_tiles, ACC_ROWS)))
        num_tiles = n_rows // tile_rows
        kernel_rows = num_tiles * tile_rows
        slabs = tile_rows // ACC_ROWS

        kernel = functools.partial(
            _gmof_partial_kernel, rho_sq=rho_sq, slabs=slabs,
            unroll=min(8, slabs))

        partials = pl.pallas_call(
            kernel,
            out_shape=jax.ShapeDtypeStruct((ACC_ROWS, LANES), jnp.float32),
            grid=(num_tiles,),
            in_specs=[pl.BlockSpec((tile_rows, LANES), lambda t: (t, 0))],
            out_specs=pl.BlockSpec((ACC_ROWS, LANES), lambda t: (0, 0)),
            compiler_params=pltpu.CompilerParams(
                dimension_semantics=("arbitrary",)),
        )(x2d)

        # Single final cross-lane/sublane reduce of one vreg-sized block.
        total = total + jnp.sum(partials, dtype=jnp.float32)

        # Remainder rows not covered by full tiles (< tile_rows rows): tiny
        # fused slice + elementwise + reduce in plain XLA.
        if kernel_rows < n_rows:
            total = total + _gmof_sum_jnp(x2d[kernel_rows:, :], rho_sq)
    else:
        # Tiny input (< 1024 elements): not worth a kernel launch.
        if head_elems > 0:
            total = total + _gmof_sum_jnp(flat[:head_elems], rho_sq)

    # Sub-lane tail (< 128 elements) when n_elems is not a multiple of 128.
    if head_elems != n_elems:
        total = total + _gmof_sum_jnp(flat[head_elems:], rho_sq)

    return (total / jnp.float32(n_elems)).astype(jnp.float32)


def gmof_ref(residual, rho=1.0):
    rho_sq = float(rho) ** 2
    sq = residual.astype(jnp.float32) ** 2
    dist = sq / (sq + rho_sq)
    return jnp.mean(rho_sq * dist)


if __name__ == "__main__":
    key = jax.random.PRNGKey(0)

    # Primary example: batch of keypoint residuals, (B, C, H, W).
    residual = jax.random.normal(key, (2, 4, 16, 16), dtype=jnp.float32)
    out = jax.block_until_ready(gmof(residual, rho=1.0))
    ref = gmof_ref(residual, rho=1.0)
    assert jnp.allclose(out, ref, rtol=2e-5, atol=2e-6), (out, ref)

    # Extra coverage of the tiled / remainder / tail paths.
    cases = [
        ((2, 4, 32, 16), 0.5, 8),     # multi-tile grid accumulation
        ((4, 5, 128),    0.5, 8),     # remainder rows handled in wrapper
        ((4, 303),       2.0, MAX_TILE_ROWS),  # non-lane-multiple tail
        ((3, 5, 7),      0.5, MAX_TILE_ROWS),  # tiny input -> jnp fallback
    ]
    for i, (shape, rho, mtr) in enumerate(cases):
        x = jax.random.normal(jax.random.PRNGKey(i + 1), shape,
                              dtype=jnp.float32)
        o = jax.block_until_ready(gmof(x, rho=rho, max_tile_rows=mtr))
        r = gmof_ref(x, rho=rho)
        assert jnp.allclose(o, r, rtol=2e-5, atol=2e-6), (shape, o, r)

    # bf16 input (kernel casts to f32 in VMEM, same as the reference path).
    xb = jax.random.normal(jax.random.PRNGKey(7), (2, 8, 64),
                           dtype=jnp.bfloat16)
    ob = jax.block_until_ready(gmof(xb, rho=1.0))
    rb = gmof_ref(xb, rho=1.0)
    assert jnp.allclose(ob, rb, rtol=2e-5, atol=2e-6), (ob, rb)

    print("KERNEL_OK")
</pallas_src>

<mosaic_0001>
module attributes {stable_mosaic.version = 11 : i64} {
  func.func @_gmof_partial_kernel(%arg0: i32, %arg1: memref<16x128xf32, #tpu.memory_space<vmem>>, %arg2: memref<8x128xf32, #tpu.memory_space<vmem>>) attributes {dimension_semantics = [#tpu.dimension_semantics<arbitrary>], iteration_bounds = array<i64: 1>, scalar_prefetch = 0 : i64, scratch_operands = 0 : i64, tpu.core_type = #tpu.core_type<tc>, window_params = [{transform_indices = @transform_0, window_bounds = array<i64: 16, 128>}, {pipeline_mode = #tpu.pipeline_mode<synchronous>, transform_indices = @transform_1, window_bounds = array<i64: 8, 128>}]} {
    %c0_i32 = arith.constant 0 : i32
    %0 = arith.cmpi eq, %arg0, %c0_i32 : i32
    %1 = arith.extui %0 : i1 to i32
    %c0_i32_0 = arith.constant 0 : i32
    %2 = arith.cmpi ne, %1, %c0_i32_0 : i32
    scf.if %2 {
      %cst_12 = arith.constant 0.000000e+00 : f32
      %31 = vector.broadcast %cst_12 : f32 to vector<8x128xf32>
      %c0_13 = arith.constant 0 : index
      %c0_14 = arith.constant 0 : index
      %32 = vector.load %arg2[%c0_13, %c0_14] : memref<8x128xf32, #tpu.memory_space<vmem>>, vector<8x128xf32>
      tpu.vector_store %arg2[%c0_13, %c0_14], %31 {strides = array<i32>} : memref<8x128xf32, #tpu.memory_space<vmem>>, vector<8x128xf32>,
    } else {
    }
    %c0 = arith.constant 0 : index
    %c0_1 = arith.constant 0 : index
    %3 = vector.load %arg2[%c0, %c0_1] : memref<8x128xf32, #tpu.memory_space<vmem>>, vector<8x128xf32>
    %cst = arith.constant 0.000000e+00 : f32
    %4 = vector.broadcast %cst : f32 to vector<8x128xf32>
    %c0_i32_2 = arith.constant 0 : i32
    %c8_i32 = arith.constant 8 : i32
    %5 = arith.muli %c0_i32_2, %c8_i32 : i32
    %6 = tpu.assume_multiple %5, 8 : i32
    %7 = arith.index_cast %6 : i32 to index
    %c0_3 = arith.constant 0 : index
    %8 = vector.load %arg1[%7, %c0_3] : memref<16x128xf32, #tpu.memory_space<vmem>>, vector<8x128xf32>
    %9 = arith.mulf %8, %8 : vector<8x128xf32>
    %cst_4 = arith.constant 1.000000e+00 : f32
    %10 = vector.broadcast %cst_4 : f32 to vector<8x128xf32>
    %11 = arith.mulf %10, %9 : vector<8x128xf32>
    %cst_5 = arith.constant 1.000000e+00 : f32
    %12 = vector.broadcast %cst_5 : f32 to vector<8x128xf32>
    %13 = arith.addf %9, %12 : vector<8x128xf32>
    %14 = tpu.reciprocal %13 : vector<8x128xf32> -> vector<8x128xf32>
    %15 = arith.mulf %11, %14 : vector<8x128xf32>
    %16 = arith.addf %4, %15 : vector<8x128xf32>
    %c1_i32 = arith.constant 1 : i32
    %c8_i32_6 = arith.constant 8 : i32
    %17 = arith.muli %c1_i32, %c8_i32_6 : i32
    %18 = tpu.assume_multiple %17, 8 : i32
    %19 = arith.index_cast %18 : i32 to index
    %c0_7 = arith.constant 0 : index
    %20 = vector.load %arg1[%19, %c0_7] : memref<16x128xf32, #tpu.memory_space<vmem>>, vector<8x128xf32>
    %21 = arith.mulf %20, %20 : vector<8x128xf32>
    %cst_8 = arith.constant 1.000000e+00 : f32
    %22 = vector.broadcast %cst_8 : f32 to vector<8x128xf32>
    %23 = arith.mulf %22, %21 : vector<8x128xf32>
    %cst_9 = arith.constant 1.000000e+00 : f32
    %24 = vector.broadcast %cst_9 : f32 to vector<8x128xf32>
    %25 = arith.addf %21, %24 : vector<8x128xf32>
    %26 = tpu.reciprocal %25 : vector<8x128xf32> -> vector<8x128xf32>
    %27 = arith.mulf %23, %26 : vector<8x128xf32>
    %28 = arith.addf %16, %27 : vector<8x128xf32>
    %c2_i32 = arith.constant 2 : i32
    %29 = arith.addf %3, %28 : vector<8x128xf32>
    %c0_10 = arith.constant 0 : index
    %c0_11 = arith.constant 0 : index
    %30 = vector.load %arg2[%c0_10, %c0_11] : memref<8x128xf32, #tpu.memory_space<vmem>>, vector<8x128xf32>
    tpu.vector_store %arg2[%c0_10, %c0_11], %29 {strides = array<i32>} : memref<8x128xf32, #tpu.memory_space<vmem>>, vector<8x128xf32>,
    return
  }
  func.func @transform_0(%arg0: i32) -> (i32, i32) {
    %c0_i32 = arith.constant 0 : i32
    %c0_i32_0 = arith.constant 0 : i32
    return %arg0, %c0_i32 : i32, i32
  }
  func.func @transform_1(%arg0: i32) -> (i32, i32) {
    %c0_i32 = arith.constant 0 : i32
    %c0_i32_0 = arith.constant 0 : i32
    %c0_i32_1 = arith.constant 0 : i32
    return %c0_i32, %c0_i32_0 : i32, i32
  }
}

</mosaic_0001>

<llo_original>
// kernel: tpu_custom_call.1
$region0: #{tpu_custom_call.1}
  #allocation0 [shape = 'u32[]', space=smem, size = 0x4, offset = 0x4, fixed_abs, tag = 'smem constant byte address 0x4 - core index']
  #allocation1 [shape = 'u32[144,128]{1,0:T(1,128)}', space=vmem, size = 0x12000, scoped, tag = 'internal scratch']
  %s0 = inlined_call_operand.hbm [shape: f32[16,128], index: 0, kind: input, shape index: {}]
  %s1 = inlined_call_operand.hbm [shape: f32[8,128], index: 1, kind: output, shape index: {}]
  %s2 = sld [smem:[#allocation0]]
  $region22: #{tpu_custom_call.1} parent=0
    _
  %s4 = ssub.s32 1, %s2
  %s5 = scalar_select 0, %s4, %s2
  $region1: #{tpu_custom_call.1} parent=0
    #allocation2 [shape = 'u8[8192]{0}', space=vmem, size = 0x2000, scoped, tag = 'input window, operand 0, single buffered']
    #allocation3 [shape = 's32[1]{0}', space=sflag, size = 0x4, scoped, tag = 'scoped memory for tpu_custom_call.1']
    #allocation4 [shape = 's32[1]{0}', space=sflag, size = 0x4, scoped, tag = 'scoped memory for tpu_custom_call.1']
    #allocation5 [shape = 'u8[4096]{0}', space=vmem, size = 0x1000, scoped, tag = 'output window, operand 0, single buffered']
    %6 = vsyncpa [#allocation3], 0
    %7 = vsyncpa [#allocation4], 0
    // Predicated region
    $region2: #{tpu_custom_call.1} parent=1 // pred_check
      _
    $region3: #{tpu_custom_call.1} parent=1 // pred_check_branch
      %9 = sbr.rel (0) target = $region5
    $region4: #{tpu_custom_call.1} parent=1 // pred_region
      %s11 = ssub.s32 256, 256
      %12 = vsyncadd [#allocation3], %s11
      %s13 = sshll.u32 [#allocation2], 4
      %s14 = int_to_ptr.vmem [resolvable:$true] %s13
      %19 = dma.hbm_to_vmem [thread:$0]  %s0, 256, %s14, [#allocation3], 128, 128, 8
    $region5: #{tpu_custom_call.1} parent=1 // pred_fallthru
      _
    // Predicated region
    $region6: #{tpu_custom_call.1} parent=1 // pred_check
      _
    $region7: #{tpu_custom_call.1} parent=1 // pred_check_branch
      %21 = sbr.rel (0) target = $region9
    $region8: #{tpu_custom_call.1} parent=1 // pred_region
      %22 = dma.done [#allocation3], 256
    $region9: #{tpu_custom_call.1} parent=1 // pred_fallthru
      _
    %p23 = scmp.eq.s32.totalorder 0, 0
    // Predicated region
    $region10: #{tpu_custom_call.1} parent=1 // pred_check
      %p24 = pneg %p23
    $region11: #{tpu_custom_call.1} parent=1 // pred_check_branch
      %26 = sbr.rel (%p24) target = $region13
    $region12: #{tpu_custom_call.1} parent=1 // pred_region
      %27 = vst [vmem:[#allocation5] sm:$0xff] 0.0
    $region13: #{tpu_custom_call.1} parent=1 // pred_fallthru
      _
    %v28 = vld [vmem:[#allocation5] sm:$0xff]
    %v29 = vld [vmem:[#allocation2] sm:$0xff]
    %v30 = vmul.f32 %v29, %v29
    %v31 = vadd.f32 %v30, 1.0
    %v32 = vrcp.pop %v31
    %v33 = vmul.f32 %v30, %v32
    %v34 = vadd.f32 %v33, 0.0
    %s35 = scalar_lea.vmem [#allocation2], 8
    %v36 = vld [vmem:[%s35] sm:$0xff]
    %v37 = vmul.f32 %v36, %v36
    %v38 = vadd.f32 %v37, 1.0
    %v39 = vrcp.pop %v38
    %v40 = vmul.f32 %v37, %v39
    %v41 = vadd.f32 %v34, %v40
    %v42 = vadd.f32 %v28, %v41
    %43 = vst [vmem:[#allocation5] sm:$0xff] %v42
    // Predicated region
    $region14: #{tpu_custom_call.1} parent=1 // pred_check
      _
    $region15: #{tpu_custom_call.1} parent=1 // pred_check_branch
      %45 = sbr.rel (0) target = $region17
    $region16: #{tpu_custom_call.1} parent=1 // pred_region
      %s47 = ssub.s32 128, 128
      %48 = vsyncadd [#allocation4], %s47
      %s50 = sshll.u32 [#allocation5], 4
      %s51 = int_to_ptr.vmem [resolvable:$true] %s50
      %53 = dma.vmem_to_hbm [thread:$0]  %s51, 128, %s1, [#allocation4]
    $region17: #{tpu_custom_call.1} parent=1 // pred_fallthru
      _
    // Predicated region
    $region18: #{tpu_custom_call.1} parent=1 // pred_check
      _
    $region19: #{tpu_custom_call.1} parent=1 // pred_check_branch
      %55 = sbr.rel (0) target = $region21
    $region20: #{tpu_custom_call.1} parent=1 // pred_region
      %56 = dma.done [#allocation4], 128
    $region21: #{tpu_custom_call.1} parent=1 // pred_fallthru
      _
    %57 = vsyncpa [#allocation3], 1
    %58 = vsyncpa [#allocation4], 1

</llo_original>
